<compile_context>
chip_gen: v5e
topology: v5e:2x2
jax: 0.10.0
libtpu: 0.0.40
codegen_flags: <defaults>
</compile_context>

<pallas_src>
import jax
import jax.numpy as jnp
from jax.experimental import pallas as pl
from jax.experimental.pallas import tpu as pltpu

_VMEM_LIMIT = 48 * 1024 * 1024   # < v7x 64 MiB physical; > default scoped limit on v5e/v6e


# -----------------------------------------------------------------------------
# Kernel 1: prompts = cat([token_prefix, ctx (broadcast over classes), token_suffix], dim=1)
# Class-blocked; three direct sub-range stores (pure load -> store stream).
# -----------------------------------------------------------------------------
def _prompt_concat_kernel(prefix_ref, ctx_ref, suffix_ref, out_ref):
    c_blk = out_ref.shape[0]
    pre_len = prefix_ref.shape[1]
    n_ctx, d = ctx_ref.shape
    out_ref[:, :pre_len, :] = prefix_ref[...].astype(out_ref.dtype)
    out_ref[:, pre_len:pre_len + n_ctx, :] = jnp.broadcast_to(
        ctx_ref[...][None], (c_blk, n_ctx, d)).astype(out_ref.dtype)
    out_ref[:, pre_len + n_ctx:, :] = suffix_ref[...].astype(out_ref.dtype)


def build_prompts(token_prefix, ctx, token_suffix, *, c_blk=None, out_dtype=None):
    n_cls, pre_len, ctx_dim = token_prefix.shape
    n_ctx = ctx.shape[0]
    suf_len = token_suffix.shape[1]
    seq_len = pre_len + n_ctx + suf_len
    if out_dtype is None:
        # Preserve the PyTorch concat dtype semantics.  If the downstream text
        # encoder consumes bf16, pass out_dtype=jnp.bfloat16 to halve HBM bytes.
        out_dtype = jnp.result_type(token_prefix.dtype, ctx.dtype, token_suffix.dtype)
    if c_blk is None:
        c_blk = min(n_cls, 32)   # big enough to amortize the ~0.35 us/step overhead

    return pl.pallas_call(
        _prompt_concat_kernel,
        out_shape=jax.ShapeDtypeStruct((n_cls, seq_len, ctx_dim), out_dtype),
        grid_spec=pltpu.PrefetchScalarGridSpec(
            num_scalar_prefetch=0,
            grid=(pl.cdiv(n_cls, c_blk),),
            in_specs=[
                pl.BlockSpec((c_blk, pre_len, ctx_dim), lambda i: (i, 0, 0)),
                # ctx is class-independent -> constant block index, loaded once
                pl.BlockSpec((n_ctx, ctx_dim), lambda i: (0, 0)),
                pl.BlockSpec((c_blk, suf_len, ctx_dim), lambda i: (i, 0, 0)),
            ],
            out_specs=pl.BlockSpec((c_blk, seq_len, ctx_dim), lambda i: (i, 0, 0)),
        ),
        compiler_params=pltpu.CompilerParams(
            dimension_semantics=("parallel",),
            vmem_limit_bytes=_VMEM_LIMIT),
    )(token_prefix, ctx, token_suffix)


# -----------------------------------------------------------------------------
# Kernel 2: grouped batched projections (pure weight stream).
#   out[d] = cat([P[d], V[d]], -1) @ W[d] + bias[d]
#          = P[d] @ W[d][:vis_dim] + V[d] @ W[d][vis_dim:] + bias[d]
# G layers per grid step; only W (bf16) is meaningful traffic.
# -----------------------------------------------------------------------------
def _proj_kernel(p_ref, v_ref, b_ref, w_ref, o_ref):
    g_blk, n_ctx, vis_dim = o_ref.shape
    for g in range(g_blk):                                  # static unroll, G small
        p = p_ref[g].astype(jnp.bfloat16)                   # (n_ctx, vis_dim)
        v = v_ref[g].astype(jnp.bfloat16)                   # (n_ctx, vis_dim)
        acc = jnp.dot(p, w_ref[g, :vis_dim, :], preferred_element_type=jnp.float32)
        acc = acc + jnp.dot(v, w_ref[g, vis_dim:, :], preferred_element_type=jnp.float32)
        o_ref[g] = (acc + b_ref[g]).astype(o_ref.dtype)


def _pick_group(depth, max_g=4):
    # Largest divisor of depth that is <= max_g (keeps W double-buffering within
    # the v7x VMEM budget; divisor avoids partial edge groups).
    for g in range(min(max_g, depth), 0, -1):
        if depth % g == 0:
            return g
    return 1


def batched_projection(P, V, W, bias, *, group=None):
    # P, V:  (depth, n_ctx, vis_dim)          -- concat along last dim is fused in-kernel
    # W:     (depth, 2*vis_dim, vis_dim)      -- pre-transposed (in x out), bf16 stream
    # bias:  (depth, 1, vis_dim)
    depth, n_ctx, vis_dim = P.shape
    in_dim = W.shape[1]                       # 2 * vis_dim
    if group is None:
        group = _pick_group(depth, max_g=4)

    w = W.astype(jnp.bfloat16)
    b = bias.astype(jnp.float32)

    return pl.pallas_call(
        _proj_kernel,
        out_shape=jax.ShapeDtypeStruct((depth, n_ctx, vis_dim), jnp.float32),
        grid_spec=pltpu.PrefetchScalarGridSpec(
            num_scalar_prefetch=0,
            grid=(depth // group,),
            in_specs=[
                pl.BlockSpec((group, n_ctx, vis_dim), lambda d: (d, 0, 0)),
                pl.BlockSpec((group, n_ctx, vis_dim), lambda d: (d, 0, 0)),
                pl.BlockSpec((group, 1, vis_dim), lambda d: (d, 0, 0)),
                # the weight group is the only meaningful DMA per grid step
                pl.BlockSpec((group, in_dim, vis_dim), lambda d: (d, 0, 0)),
            ],
            out_specs=pl.BlockSpec((group, n_ctx, vis_dim), lambda d: (d, 0, 0)),
        ),
        compiler_params=pltpu.CompilerParams(
            dimension_semantics=("parallel",),
            vmem_limit_bytes=_VMEM_LIMIT),
    )(P, V, b, w)


# -----------------------------------------------------------------------------
# PromptLearnerTarget (use_aux=True branch) forward
# -----------------------------------------------------------------------------
def prompt_learner_target_forward(params, share, vis):
    """share: (n_ctx, vis_dim); vis: (depth-1, n_ctx, vis_dim)."""
    # ctx.dim() == 2 -> broadcast over classes happens inside the concat kernel
    prompts = build_prompts(params["token_prefix"], params["ctx"],
                            params["token_suffix"])

    # layer 0      = self.proj on cat(prompts_vis[0], share)
    # layers 1..11 = compound_prompt_projections[i-1] on cat(prompts_vis[i], vis[i-1])
    P = params["prompts_vis"]                        # (depth, n_ctx, vis_dim)
    V = jnp.concatenate([share[None], vis], axis=0)  # (depth, n_ctx, vis_dim), tiny
    proj_out = batched_projection(P, V, params["proj_W"], params["proj_b"])

    vision_prompt = proj_out[0]                      # (n_ctx, vis_dim)
    visual_deep_prompts = proj_out[1:]               # stacked (depth-1, n_ctx, vis_dim)
    prompts_text = params["prompts_text"]            # stacked (depth-1, n_ctx, ctx_dim)
    # TODO(synk): use_aux=False branch is a pure parameter passthrough (no kernel needed).
    return prompts, vision_prompt, prompts_text, visual_deep_prompts


# -----------------------------------------------------------------------------
# Deterministic parameter construction (synthetic, small shapes)
# -----------------------------------------------------------------------------
def make_params(key, *, n_cls, n_ctx, ctx_dim, vis_dim, seq_len, depth):
    ks = jax.random.split(key, 8)
    suf_len = seq_len - 1 - n_ctx
    params = {
        "ctx": 0.02 * jax.random.normal(ks[0], (n_ctx, ctx_dim), jnp.float32),
        "token_prefix": jax.random.normal(ks[1], (n_cls, 1, ctx_dim), jnp.float32),
        "token_suffix": jax.random.normal(ks[2], (n_cls, suf_len, ctx_dim), jnp.float32),
        "prompts_text": 0.02 * jax.random.normal(ks[3], (depth - 1, n_ctx, ctx_dim), jnp.float32),
        "prompts_vis": 0.02 * jax.random.normal(ks[4], (depth, n_ctx, vis_dim), jnp.float32),
        # Linear(2*vis_dim, vis_dim) per layer, stored as (in, out); layer 0 is self.proj.
        # Weights stored bf16 (kernel 2 is HBM-BW bound on weight loads).
        "proj_W": (0.02 * jax.random.normal(ks[5], (depth, 2 * vis_dim, vis_dim),
                                            jnp.float32)).astype(jnp.bfloat16),
        "proj_b": 0.02 * jax.random.normal(ks[6], (depth, 1, vis_dim), jnp.float32),
    }
    return params


if __name__ == "__main__":
    # Small shapes consistent with the module (real model: ctx_dim=512, vis_dim=768, seq=77).
    n_cls, n_ctx, ctx_dim, vis_dim, seq_len, depth = 2, 4, 64, 128, 16, 12

    key = jax.random.PRNGKey(0)
    kp, ki = jax.random.split(key)
    params = make_params(kp, n_cls=n_cls, n_ctx=n_ctx, ctx_dim=ctx_dim,
                         vis_dim=vis_dim, seq_len=seq_len, depth=depth)

    k1, k2 = jax.random.split(ki)
    share = jax.random.normal(k1, (n_ctx, vis_dim), jnp.float32)
    vis = jax.random.normal(k2, (depth - 1, n_ctx, vis_dim), jnp.float32)

    fwd = jax.jit(prompt_learner_target_forward)
    prompts, vision_prompt, prompts_text, visual_deep_prompts = jax.block_until_ready(
        fwd(params, share, vis)
    )

    # --- pure-JAX reference check ---
    ctx_b = jnp.broadcast_to(params["ctx"][None], (n_cls, n_ctx, ctx_dim))
    prompts_ref = jnp.concatenate(
        [params["token_prefix"], ctx_b, params["token_suffix"]], axis=1)
    assert jnp.allclose(prompts, prompts_ref, atol=1e-6)

    V_full = jnp.concatenate([share[None], vis], axis=0)
    X = jnp.concatenate([params["prompts_vis"], V_full], axis=-1)
    X_bf = X.astype(jnp.bfloat16).astype(jnp.float32)       # same rounding as the kernel
    W_f32 = params["proj_W"].astype(jnp.float32)
    proj_ref = jnp.einsum("dni,dio->dno", X_bf, W_f32,
                          precision=jax.lax.Precision.HIGHEST) + params["proj_b"]
    assert jnp.allclose(vision_prompt, proj_ref[0], atol=1e-2)
    assert jnp.allclose(visual_deep_prompts, proj_ref[1:], atol=1e-2)

    assert prompts.shape == (n_cls, seq_len, ctx_dim)
    assert vision_prompt.shape == (n_ctx, vis_dim)
    assert prompts_text.shape == (depth - 1, n_ctx, ctx_dim)
    assert visual_deep_prompts.shape == (depth - 1, n_ctx, vis_dim)

    print("KERNEL_OK")
</pallas_src>

<mosaic_0001>
module attributes {stable_mosaic.version = 11 : i64} {
  func.func @_prompt_concat_kernel(%arg0: i32, %arg1: memref<2x1x64xf32, #tpu.memory_space<vmem>>, %arg2: memref<4x64xf32, #tpu.memory_space<vmem>>, %arg3: memref<2x11x64xf32, #tpu.memory_space<vmem>>, %arg4: memref<2x16x64xf32, #tpu.memory_space<vmem>>) attributes {dimension_semantics = [#tpu.dimension_semantics<parallel>], iteration_bounds = array<i64: 1>, scalar_prefetch = 0 : i64, scratch_operands = 0 : i64, tpu.core_type = #tpu.core_type<tc>, window_params = [{transform_indices = @transform_0, window_bounds = array<i64: 2, 1, 64>}, {pipeline_mode = #tpu.pipeline_mode<synchronous>, transform_indices = @transform_1, window_bounds = array<i64: 4, 64>}, {transform_indices = @transform_2, window_bounds = array<i64: 2, 11, 64>}, {transform_indices = @transform_3, window_bounds = array<i64: 2, 16, 64>}]} {
    %c0 = arith.constant 0 : index
    %c0_0 = arith.constant 0 : index
    %c0_1 = arith.constant 0 : index
    %0 = vector.load %arg1[%c0, %c0_0, %c0_1] : memref<2x1x64xf32, #tpu.memory_space<vmem>>, vector<2x1x64xf32>
    %c0_2 = arith.constant 0 : index
    %c0_3 = arith.constant 0 : index
    %c0_4 = arith.constant 0 : index
    %1 = vector.load %arg4[%c0_2, %c0_3, %c0_4] : memref<2x16x64xf32, #tpu.memory_space<vmem>>, vector<2x1x64xf32>
    tpu.vector_store %arg4[%c0_2, %c0_3, %c0_4], %0 {strides = array<i32>} : memref<2x16x64xf32, #tpu.memory_space<vmem>>, vector<2x1x64xf32>,
    %c0_5 = arith.constant 0 : index
    %c0_6 = arith.constant 0 : index
    %2 = vector.load %arg2[%c0_5, %c0_6] : memref<4x64xf32, #tpu.memory_space<vmem>>, vector<4x64xf32>
    %3 = vector.shape_cast %2 : vector<4x64xf32> to vector<1x4x64xf32>
    %4 = vector.shape_cast %3 : vector<1x4x64xf32> to vector<1x4x64xf32>
    %5 = vector.broadcast %4 : vector<1x4x64xf32> to vector<2x4x64xf32>
    %c0_7 = arith.constant 0 : index
    %c1 = arith.constant 1 : index
    %c0_8 = arith.constant 0 : index
    %6 = vector.load %arg4[%c0_7, %c1, %c0_8] : memref<2x16x64xf32, #tpu.memory_space<vmem>>, vector<2x4x64xf32>
    tpu.vector_store %arg4[%c0_7, %c1, %c0_8], %5 {strides = array<i32>} : memref<2x16x64xf32, #tpu.memory_space<vmem>>, vector<2x4x64xf32>,
    %c0_9 = arith.constant 0 : index
    %c0_10 = arith.constant 0 : index
    %c0_11 = arith.constant 0 : index
    %7 = vector.load %arg3[%c0_9, %c0_10, %c0_11] : memref<2x11x64xf32, #tpu.memory_space<vmem>>, vector<2x11x64xf32>
    %c0_12 = arith.constant 0 : index
    %c5 = arith.constant 5 : index
    %c0_13 = arith.constant 0 : index
    %8 = vector.load %arg4[%c0_12, %c5, %c0_13] : memref<2x16x64xf32, #tpu.memory_space<vmem>>, vector<2x11x64xf32>
    tpu.vector_store %arg4[%c0_12, %c5, %c0_13], %7 {strides = array<i32>} : memref<2x16x64xf32, #tpu.memory_space<vmem>>, vector<2x11x64xf32>,
    return
  }
  func.func @transform_0(%arg0: i32) -> (i32, i32, i32) {
    %c0_i32 = arith.constant 0 : i32
    %c0_i32_0 = arith.constant 0 : i32
    %c0_i32_1 = arith.constant 0 : i32
    return %arg0, %c0_i32, %c0_i32_0 : i32, i32, i32
  }
  func.func @transform_1(%arg0: i32) -> (i32, i32) {
    %c0_i32 = arith.constant 0 : i32
    %c0_i32_0 = arith.constant 0 : i32
    %c0_i32_1 = arith.constant 0 : i32
    return %c0_i32, %c0_i32_0 : i32, i32
  }
  func.func @transform_2(%arg0: i32) -> (i32, i32, i32) {
    %c0_i32 = arith.constant 0 : i32
    %c0_i32_0 = arith.constant 0 : i32
    %c0_i32_1 = arith.constant 0 : i32
    return %arg0, %c0_i32, %c0_i32_0 : i32, i32, i32
  }
  func.func @transform_3(%arg0: i32) -> (i32, i32, i32) {
    %c0_i32 = arith.constant 0 : i32
    %c0_i32_0 = arith.constant 0 : i32
    %c0_i32_1 = arith.constant 0 : i32
    return %arg0, %c0_i32, %c0_i32_0 : i32, i32, i32
  }
}

module attributes {stable_mosaic.version = 11 : i64} {
  func.func @_proj_kernel(%arg0: i32, %arg1: memref<4x4x128xf32, #tpu.memory_space<vmem>>, %arg2: memref<4x4x128xf32, #tpu.memory_space<vmem>>, %arg3: memref<4x1x128xf32, #tpu.memory_space<vmem>>, %arg4: memref<4x256x128xbf16, #tpu.memory_space<vmem>>, %arg5: memref<4x4x128xf32, #tpu.memory_space<vmem>>) attributes {dimension_semantics = [#tpu.dimension_semantics<parallel>], iteration_bounds = array<i64: 3>, scalar_prefetch = 0 : i64, scratch_operands = 0 : i64, tpu.core_type = #tpu.core_type<tc>, window_params = [{transform_indices = @transform_0, window_bounds = array<i64: 4, 4, 128>}, {transform_indices = @transform_1, window_bounds = array<i64: 4, 4, 128>}, {transform_indices = @transform_2, window_bounds = array<i64: 4, 1, 128>}, {transform_indices = @transform_3, window_bounds = array<i64: 4, 256, 128>}, {transform_indices = @transform_4, window_bounds = array<i64: 4, 4, 128>}]} {
    %c0 = arith.constant 0 : index
    %c0_0 = arith.constant 0 : index
    %c0_1 = arith.constant 0 : index
    %0 = vector.load %arg1[%c0, %c0_0, %c0_1] : memref<4x4x128xf32, #tpu.memory_space<vmem>>, vector<1x4x128xf32>
    %1 = vector.shape_cast %0 : vector<1x4x128xf32> to vector<4x128xf32>
    %2 = arith.truncf %1 : vector<4x128xf32> to vector<4x128xbf16>
    %c0_2 = arith.constant 0 : index
    %c0_3 = arith.constant 0 : index
    %c0_4 = arith.constant 0 : index
    %3 = vector.load %arg2[%c0_2, %c0_3, %c0_4] : memref<4x4x128xf32, #tpu.memory_space<vmem>>, vector<1x4x128xf32>
    %4 = vector.shape_cast %3 : vector<1x4x128xf32> to vector<4x128xf32>
    %5 = arith.truncf %4 : vector<4x128xf32> to vector<4x128xbf16>
    %c0_5 = arith.constant 0 : index
    %c0_6 = arith.constant 0 : index
    %c0_7 = arith.constant 0 : index
    %6 = vector.load %arg4[%c0_5, %c0_6, %c0_7] : memref<4x256x128xbf16, #tpu.memory_space<vmem>>, vector<1x128x128xbf16>
    %7 = vector.shape_cast %6 : vector<1x128x128xbf16> to vector<128x128xbf16>
    %cst = arith.constant dense<0.000000e+00> : vector<4x128xf32>
    %8 = tpu.matmul %2, %7, %cst {dimension_numbers = #tpu.dot_dimension_numbers<[1], [0], [0], [1], [0, 0, 1, 1], [], []>} : vector<4x128xbf16>, vector<128x128xbf16>, vector<4x128xf32> -> vector<4x128xf32>
    %c0_8 = arith.constant 0 : index
    %c128 = arith.constant 128 : index
    %c0_9 = arith.constant 0 : index
    %9 = vector.load %arg4[%c0_8, %c128, %c0_9] : memref<4x256x128xbf16, #tpu.memory_space<vmem>>, vector<1x128x128xbf16>
    %10 = vector.shape_cast %9 : vector<1x128x128xbf16> to vector<128x128xbf16>
    %cst_10 = arith.constant dense<0.000000e+00> : vector<4x128xf32>
    %11 = tpu.matmul %5, %10, %cst_10 {dimension_numbers = #tpu.dot_dimension_numbers<[1], [0], [0], [1], [0, 0, 1, 1], [], []>} : vector<4x128xbf16>, vector<128x128xbf16>, vector<4x128xf32> -> vector<4x128xf32>
    %12 = arith.addf %8, %11 : vector<4x128xf32>
    %c0_11 = arith.constant 0 : index
    %c0_12 = arith.constant 0 : index
    %c0_13 = arith.constant 0 : index
    %13 = vector.load %arg3[%c0_11, %c0_12, %c0_13] : memref<4x1x128xf32, #tpu.memory_space<vmem>>, vector<1x1x128xf32>
    %14 = vector.shape_cast %13 : vector<1x1x128xf32> to vector<1x128xf32>
    %15 = vector.broadcast %14 : vector<1x128xf32> to vector<4x128xf32>
    %16 = arith.addf %12, %15 : vector<4x128xf32>
    %c0_14 = arith.constant 0 : index
    %c0_15 = arith.constant 0 : index
    %c0_16 = arith.constant 0 : index
    %17 = vector.load %arg5[%c0_14, %c0_15, %c0_16] : memref<4x4x128xf32, #tpu.memory_space<vmem>>, vector<1x4x128xf32>
    %18 = vector.shape_cast %17 : vector<1x4x128xf32> to vector<4x128xf32>
    %19 = vector.shape_cast %16 : vector<4x128xf32> to vector<1x4x128xf32>
    tpu.vector_store %arg5[%c0_14, %c0_15, %c0_16], %19 {strides = array<i32>} : memref<4x4x128xf32, #tpu.memory_space<vmem>>, vector<1x4x128xf32>,
    %c1 = arith.constant 1 : index
    %c0_17 = arith.constant 0 : index
    %c0_18 = arith.constant 0 : index
    %20 = vector.load %arg1[%c1, %c0_17, %c0_18] : memref<4x4x128xf32, #tpu.memory_space<vmem>>, vector<1x4x128xf32>
    %21 = vector.shape_cast %20 : vector<1x4x128xf32> to vector<4x128xf32>
    %22 = arith.truncf %21 : vector<4x128xf32> to vector<4x128xbf16>
    %c1_19 = arith.constant 1 : index
    %c0_20 = arith.constant 0 : index
    %c0_21 = arith.constant 0 : index
    %23 = vector.load %arg2[%c1_19, %c0_20, %c0_21] : memref<4x4x128xf32, #tpu.memory_space<vmem>>, vector<1x4x128xf32>
    %24 = vector.shape_cast %23 : vector<1x4x128xf32> to vector<4x128xf32>
    %25 = arith.truncf %24 : vector<4x128xf32> to vector<4x128xbf16>
    %c1_22 = arith.constant 1 : index
    %c0_23 = arith.constant 0 : index
    %c0_24 = arith.constant 0 : index
    %26 = vector.load %arg4[%c1_22, %c0_23, %c0_24] : memref<4x256x128xbf16, #tpu.memory_space<vmem>>, vector<1x128x128xbf16>
    %27 = vector.shape_cast %26 : vector<1x128x128xbf16> to vector<128x128xbf16>
    %cst_25 = arith.constant dense<0.000000e+00> : vector<4x128xf32>
    %28 = tpu.matmul %22, %27, %cst_25 {dimension_numbers = #tpu.dot_dimension_numbers<[1], [0], [0], [1], [0, 0, 1, 1], [], []>} : vector<4x128xbf16>, vector<128x128xbf16>, vector<4x128xf32> -> vector<4x128xf32>
    %c1_26 = arith.constant 1 : index
    %c128_27 = arith.constant 128 : index
    %c0_28 = arith.constant 0 : index
    %29 = vector.load %arg4[%c1_26, %c128_27, %c0_28] : memref<4x256x128xbf16, #tpu.memory_space<vmem>>, vector<1x128x128xbf16>
    %30 = vector.shape_cast %29 : vector<1x128x128xbf16> to vector<128x128xbf16>
    %cst_29 = arith.constant dense<0.000000e+00> : vector<4x128xf32>
    %31 = tpu.matmul %25, %30, %cst_29 {dimension_numbers = #tpu.dot_dimension_numbers<[1], [0], [0], [1], [0, 0, 1, 1], [], []>} : vector<4x128xbf16>, vector<128x128xbf16>, vector<4x128xf32> -> vector<4x128xf32>
    %32 = arith.addf %28, %31 : vector<4x128xf32>
    %c1_30 = arith.constant 1 : index
    %c0_31 = arith.constant 0 : index
    %c0_32 = arith.constant 0 : index
    %33 = vector.load %arg3[%c1_30, %c0_31, %c0_32] : memref<4x1x128xf32, #tpu.memory_space<vmem>>, vector<1x1x128xf32>
    %34 = vector.shape_cast %33 : vector<1x1x128xf32> to vector<1x128xf32>
    %35 = vector.broadcast %34 : vector<1x128xf32> to vector<4x128xf32>
    %36 = arith.addf %32, %35 : vector<4x128xf32>
    %c1_33 = arith.constant 1 : index
    %c0_34 = arith.constant 0 : index
    %c0_35 = arith.constant 0 : index
    %37 = vector.load %arg5[%c1_33, %c0_34, %c0_35] : memref<4x4x128xf32, #tpu.memory_space<vmem>>, vector<1x4x128xf32>
    %38 = vector.shape_cast %37 : vector<1x4x128xf32> to vector<4x128xf32>
    %39 = vector.shape_cast %36 : vector<4x128xf32> to vector<1x4x128xf32>
    tpu.vector_store %arg5[%c1_33, %c0_34, %c0_35], %39 {strides = array<i32>} : memref<4x4x128xf32, #tpu.memory_space<vmem>>, vector<1x4x128xf32>,
    %c2 = arith.constant 2 : index
    %c0_36 = arith.constant 0 : index
    %c0_37 = arith.constant 0 : index
    %40 = vector.load %arg1[%c2, %c0_36, %c0_37] : memref<4x4x128xf32, #tpu.memory_space<vmem>>, vector<1x4x128xf32>
    %41 = vector.shape_cast %40 : vector<1x4x128xf32> to vector<4x128xf32>
    %42 = arith.truncf %41 : vector<4x128xf32> to vector<4x128xbf16>
    %c2_38 = arith.constant 2 : index
    %c0_39 = arith.constant 0 : index
    %c0_40 = arith.constant 0 : index
    %43 = vector.load %arg2[%c2_38, %c0_39, %c0_40] : memref<4x4x128xf32, #tpu.memory_space<vmem>>, vector<1x4x128xf32>
    %44 = vector.shape_cast %43 : vector<1x4x128xf32> to vector<4x128xf32>
    %45 = arith.truncf %44 : vector<4x128xf32> to vector<4x128xbf16>
    %c2_41 = arith.constant 2 : index
    %c0_42 = arith.constant 0 : index
    %c0_43 = arith.constant 0 : index
    %46 = vector.load %arg4[%c2_41, %c0_42, %c0_43] : memref<4x256x128xbf16, #tpu.memory_space<vmem>>, vector<1x128x128xbf16>
    %47 = vector.shape_cast %46 : vector<1x128x128xbf16> to vector<128x128xbf16>
    %cst_44 = arith.constant dense<0.000000e+00> : vector<4x128xf32>
    %48 = tpu.matmul %42, %47, %cst_44 {dimension_numbers = #tpu.dot_dimension_numbers<[1], [0], [0], [1], [0, 0, 1, 1], [], []>} : vector<4x128xbf16>, vector<128x128xbf16>, vector<4x128xf32> -> vector<4x128xf32>
    %c2_45 = arith.constant 2 : index
    %c128_46 = arith.constant 128 : index
    %c0_47 = arith.constant 0 : index
    %49 = vector.load %arg4[%c2_45, %c128_46, %c0_47] : memref<4x256x128xbf16, #tpu.memory_space<vmem>>, vector<1x128x128xbf16>
    %50 = vector.shape_cast %49 : vector<1x128x128xbf16> to vector<128x128xbf16>
    %cst_48 = arith.constant dense<0.000000e+00> : vector<4x128xf32>
    %51 = tpu.matmul %45, %50, %cst_48 {dimension_numbers = #tpu.dot_dimension_numbers<[1], [0], [0], [1], [0, 0, 1, 1], [], []>} : vector<4x128xbf16>, vector<128x128xbf16>, vector<4x128xf32> -> vector<4x128xf32>
    %52 = arith.addf %48, %51 : vector<4x128xf32>
    %c2_49 = arith.constant 2 : index
    %c0_50 = arith.constant 0 : index
    %c0_51 = arith.constant 0 : index
    %53 = vector.load %arg3[%c2_49, %c0_50, %c0_51] : memref<4x1x128xf32, #tpu.memory_space<vmem>>, vector<1x1x128xf32>
    %54 = vector.shape_cast %53 : vector<1x1x128xf32> to vector<1x128xf32>
    %55 = vector.broadcast %54 : vector<1x128xf32> to vector<4x128xf32>
    %56 = arith.addf %52, %55 : vector<4x128xf32>
    %c2_52 = arith.constant 2 : index
    %c0_53 = arith.constant 0 : index
    %c0_54 = arith.constant 0 : index
    %57 = vector.load %arg5[%c2_52, %c0_53, %c0_54] : memref<4x4x128xf32, #tpu.memory_space<vmem>>, vector<1x4x128xf32>
    %58 = vector.shape_cast %57 : vector<1x4x128xf32> to vector<4x128xf32>
    %59 = vector.shape_cast %56 : vector<4x128xf32> to vector<1x4x128xf32>
    tpu.vector_store %arg5[%c2_52, %c0_53, %c0_54], %59 {strides = array<i32>} : memref<4x4x128xf32, #tpu.memory_space<vmem>>, vector<1x4x128xf32>,
    %c3 = arith.constant 3 : index
    %c0_55 = arith.constant 0 : index
    %c0_56 = arith.constant 0 : index
    %60 = vector.load %arg1[%c3, %c0_55, %c0_56] : memref<4x4x128xf32, #tpu.memory_space<vmem>>, vector<1x4x128xf32>
    %61 = vector.shape_cast %60 : vector<1x4x128xf32> to vector<4x128xf32>
    %62 = arith.truncf %61 : vector<4x128xf32> to vector<4x128xbf16>
    %c3_57 = arith.constant 3 : index
    %c0_58 = arith.constant 0 : index
    %c0_59 = arith.constant 0 : index
    %63 = vector.load %arg2[%c3_57, %c0_58, %c0_59] : memref<4x4x128xf32, #tpu.memory_space<vmem>>, vector<1x4x128xf32>
    %64 = vector.shape_cast %63 : vector<1x4x128xf32> to vector<4x128xf32>
    %65 = arith.truncf %64 : vector<4x128xf32> to vector<4x128xbf16>
    %c3_60 = arith.constant 3 : index
    %c0_61 = arith.constant 0 : index
    %c0_62 = arith.constant 0 : index
    %66 = vector.load %arg4[%c3_60, %c0_61, %c0_62] : memref<4x256x128xbf16, #tpu.memory_space<vmem>>, vector<1x128x128xbf16>
    %67 = vector.shape_cast %66 : vector<1x128x128xbf16> to vector<128x128xbf16>
    %cst_63 = arith.constant dense<0.000000e+00> : vector<4x128xf32>
    %68 = tpu.matmul %62, %67, %cst_63 {dimension_numbers = #tpu.dot_dimension_numbers<[1], [0], [0], [1], [0, 0, 1, 1], [], []>} : vector<4x128xbf16>, vector<128x128xbf16>, vector<4x128xf32> -> vector<4x128xf32>
    %c3_64 = arith.constant 3 : index
    %c128_65 = arith.constant 128 : index
    %c0_66 = arith.constant 0 : index
    %69 = vector.load %arg4[%c3_64, %c128_65, %c0_66] : memref<4x256x128xbf16, #tpu.memory_space<vmem>>, vector<1x128x128xbf16>
    %70 = vector.shape_cast %69 : vector<1x128x128xbf16> to vector<128x128xbf16>
    %cst_67 = arith.constant dense<0.000000e+00> : vector<4x128xf32>
    %71 = tpu.matmul %65, %70, %cst_67 {dimension_numbers = #tpu.dot_dimension_numbers<[1], [0], [0], [1], [0, 0, 1, 1], [], []>} : vector<4x128xbf16>, vector<128x128xbf16>, vector<4x128xf32> -> vector<4x128xf32>
    %72 = arith.addf %68, %71 : vector<4x128xf32>
    %c3_68 = arith.constant 3 : index
    %c0_69 = arith.constant 0 : index
    %c0_70 = arith.constant 0 : index
    %73 = vector.load %arg3[%c3_68, %c0_69, %c0_70] : memref<4x1x128xf32, #tpu.memory_space<vmem>>, vector<1x1x128xf32>
    %74 = vector.shape_cast %73 : vector<1x1x128xf32> to vector<1x128xf32>
    %75 = vector.broadcast %74 : vector<1x128xf32> to vector<4x128xf32>
    %76 = arith.addf %72, %75 : vector<4x128xf32>
    %c3_71 = arith.constant 3 : index
    %c0_72 = arith.constant 0 : index
    %c0_73 = arith.constant 0 : index
    %77 = vector.load %arg5[%c3_71, %c0_72, %c0_73] : memref<4x4x128xf32, #tpu.memory_space<vmem>>, vector<1x4x128xf32>
    %78 = vector.shape_cast %77 : vector<1x4x128xf32> to vector<4x128xf32>
    %79 = vector.shape_cast %76 : vector<4x128xf32> to vector<1x4x128xf32>
    tpu.vector_store %arg5[%c3_71, %c0_72, %c0_73], %79 {strides = array<i32>} : memref<4x4x128xf32, #tpu.memory_space<vmem>>, vector<1x4x128xf32>,
    return
  }
  func.func @transform_0(%arg0: i32) -> (i32, i32, i32) {
    %c0_i32 = arith.constant 0 : i32
    %c0_i32_0 = arith.constant 0 : i32
    %c0_i32_1 = arith.constant 0 : i32
    return %arg0, %c0_i32, %c0_i32_0 : i32, i32, i32
  }
  func.func @transform_1(%arg0: i32) -> (i32, i32, i32) {
    %c0_i32 = arith.constant 0 : i32
    %c0_i32_0 = arith.constant 0 : i32
    %c0_i32_1 = arith.constant 0 : i32
    return %arg0, %c0_i32, %c0_i32_0 : i32, i32, i32
  }
  func.func @transform_2(%arg0: i32) -> (i32, i32, i32) {
    %c0_i32 = arith.constant 0 : i32
    %c0_i32_0 = arith.constant 0 : i32
    %c0_i32_1 = arith.constant 0 : i32
    return %arg0, %c0_i32, %c0_i32_0 : i32, i32, i32
  }
  func.func @transform_3(%arg0: i32) -> (i32, i32, i32) {
    %c0_i32 = arith.constant 0 : i32
    %c0_i32_0 = arith.constant 0 : i32
    %c0_i32_1 = arith.constant 0 : i32
    return %arg0, %c0_i32, %c0_i32_0 : i32, i32, i32
  }
  func.func @transform_4(%arg0: i32) -> (i32, i32, i32) {
    %c0_i32 = arith.constant 0 : i32
    %c0_i32_0 = arith.constant 0 : i32
    %c0_i32_1 = arith.constant 0 : i32
    return %arg0, %c0_i32, %c0_i32_0 : i32, i32, i32
  }
}

</mosaic_0001>

<llo_original>
// kernel: prompt_learner_target_forward.2
$region0: #{prompt_learner_target_forward.2}
  #allocation0 [shape = 'u32[]', space=smem, size = 0x4, offset = 0x4, fixed_abs, tag = 'smem constant byte address 0x4 - core index']
  #allocation1 [shape = 'u32[72,128]{1,0:T(1,128)}', space=vmem, size = 0x9000, scoped, tag = 'internal scratch']
  %s0 = inlined_call_operand.vmem [shape: f32[2,1,64], index: 0, kind: input, shape index: {}]
  %s1 = inlined_call_operand.vmem [shape: f32[4,64], index: 1, kind: input, shape index: {}]
  %s2 = inlined_call_operand.vmem [shape: f32[2,11,64], index: 2, kind: input, shape index: {}]
  %s3 = inlined_call_operand.hbm [shape: f32[2,16,64], index: 3, kind: output, shape index: {}]
  %s4 = sld [smem:[#allocation0]]
  $region22: #{prompt_learner_target_forward.2} parent=0
    _
  %s6 = ssub.s32 1, %s4
  %s7 = scalar_select 0, %s6, %s4
  $region1: #{prompt_learner_target_forward.2} parent=0
    #allocation2 [shape = 'u8[16384]{0}', space=vmem, size = 0x4000, scoped, tag = 'output window, operand 0, single buffered']
    #allocation3 [shape = 's32[1]{0}', space=sflag, size = 0x4, scoped, tag = 'scoped memory for prompt_learner_target_forward.2']
    %8 = vsyncpa [#allocation3], 0
    // Predicated region
    $region2: #{prompt_learner_target_forward.2} parent=1 // pred_check
      _
    $region3: #{prompt_learner_target_forward.2} parent=1 // pred_check_branch
      %10 = sbr.rel (0) target = $region5
    $region4: #{prompt_learner_target_forward.2} parent=1 // pred_region
      _
    $region5: #{prompt_learner_target_forward.2} parent=1 // pred_fallthru
      _
    // Predicated region
    $region6: #{prompt_learner_target_forward.2} parent=1 // pred_check
      _
    $region7: #{prompt_learner_target_forward.2} parent=1 // pred_check_branch
      %12 = sbr.rel (0) target = $region9
    $region8: #{prompt_learner_target_forward.2} parent=1 // pred_region
      _
    $region9: #{prompt_learner_target_forward.2} parent=1 // pred_fallthru
      _
    // Predicated region
    $region10: #{prompt_learner_target_forward.2} parent=1 // pred_check
      _
    $region11: #{prompt_learner_target_forward.2} parent=1 // pred_check_branch
      %14 = sbr.rel (0) target = $region13
    $region12: #{prompt_learner_target_forward.2} parent=1 // pred_region
      _
    $region13: #{prompt_learner_target_forward.2} parent=1 // pred_fallthru
      _
    %v15 = vld [vmem:[%s0] sm:$0x1]
    %v16 = vld [vmem:[%s0 + $0x1] sm:$0x1]
    %vm17 = vcmask 516096
    %18 = vst.msk [vmem:[#allocation2] sm:$0x1] %vm17, %v15
    %19 = vst.msk [vmem:[#allocation2 + $0x10] sm:$0x1] %vm17, %v16
    %v20 = vld [vmem:[%s1] sm:$0xf]
    %vm21 = vcmask 519168
    %22 = vst.msk [vmem:[#allocation2 + $0x1] sm:$0xf] %vm21, %v20
    %23 = vst.msk [vmem:[#allocation2 + $0x11] sm:$0xf] %vm21, %v20
    %v24 = vld [vmem:[%s2] sm:$0xff]
    %v25 = vld [vmem:[%s2 + $0x8] sm:$0x7]
    %v26 = vld [vmem:[%s2 + $0x10] sm:$0xff]
    %v27 = vld [vmem:[%s2 + $0x18] sm:$0x7]
    %vm28 = vcmask 523264
    %29 = vst.msk [vmem:[#allocation2 + $0x5] sm:$0xff] %vm28, %v24
    %vm30 = vcmask 518144
    %31 = vst.msk [vmem:[#allocation2 + $0xd] sm:$0x7] %vm30, %v25
    %32 = vst.msk [vmem:[#allocation2 + $0x15] sm:$0xff] %vm28, %v26
    %33 = vst.msk [vmem:[#allocation2 + $0x1d] sm:$0x7] %vm30, %v27
    // Predicated region
    $region14: #{prompt_learner_target_forward.2} parent=1 // pred_check
      _
    $region15: #{prompt_learner_target_forward.2} parent=1 // pred_check_branch
      %35 = sbr.rel (0) target = $region17
    $region16: #{prompt_learner_target_forward.2} parent=1 // pred_region
      %37 = vsyncadd [#allocation3], 0
      %s38 = sshll.u32 [#allocation2], 4
      %s39 = int_to_ptr.vmem [resolvable:$true] %s38
      %s40 = sshll.u32 %s3, 4
      %s41 = int_to_ptr.hbm [resolvable:$true] %s40
      %46 = dma.vmem_to_hbm [thread:$0]  %s39, 512, %s41, [#allocation3], 128, 128, 8
    $region17: #{prompt_learner_target_forward.2} parent=1 // pred_fallthru
      _
    // Predicated region
    $region18: #{prompt_learner_target_forward.2} parent=1 // pred_check
      _
    $region19: #{prompt_learner_target_forward.2} parent=1 // pred_check_branch
      %48 = sbr.rel (0) target = $region21
    $region20: #{prompt_learner_target_forward.2} parent=1 // pred_region
      %50 = dma.done [#allocation3], 512
    $region21: #{prompt_learner_target_forward.2} parent=1 // pred_fallthru
      _
    %51 = vsyncpa [#allocation3], 1

// kernel: prompt_learner_target_forward.3
$region0: #{prompt_learner_target_forward.3}
  #allocation0 [shape = 'u32[]', space=smem, size = 0x4, offset = 0x4, fixed_abs, tag = 'smem constant byte address 0x4 - core index']
  #allocation1 [shape = 'u32[72,128]{1,0:T(1,128)}', space=vmem, size = 0x9000, scoped, tag = 'internal scratch']
  %s0 = inlined_call_operand.vmem [shape: f32[12,4,128], index: 0, kind: input, shape index: {}]
  %s1 = inlined_call_operand.vmem [shape: f32[12,4,128], index: 1, kind: input, shape index: {}]
  %s2 = inlined_call_operand.vmem [shape: f32[12,1,128], index: 2, kind: input, shape index: {}]
  %s3 = inlined_call_operand.hbm [shape: bf16[12,256,128], index: 3, kind: input, shape index: {}]
  %s4 = inlined_call_operand.vmem [shape: f32[12,4,128], index: 4, kind: output, shape index: {}]
  %s5 = sld [smem:[#allocation0]]
  $region53: #{prompt_learner_target_forward.3} parent=0
    _
  %s7 = ssub.s32 1, %s5
  %s8 = scalar_select 0, %s7, %s5
  $region1: #{prompt_learner_target_forward.3} parent=0
    #allocation2 [shape = 'u8[524288]{0}', space=vmem, size = 0x80000, scoped, tag = 'input window, operand 3']
    #allocation3 [shape = 's32[2]{0}', space=sflag, size = 0x8, scoped, tag = 'scoped memory for prompt_learner_target_forward.3']
    %9 = vsyncpa [#allocation3], 0
    %s10 = scalar_lea.sflag [#allocation3], 1
    %11 = vsyncpa %s10, 0
    loop: start=0, step=1, limit=5
    $region2: #{prompt_learner_target_forward.3} parent=1 // loop_pre_header
      _
    $region3: #{prompt_learner_target_forward.3} parent=1 // loop_header
      %s13 = sphi 0, %s17
      %p14 = scmp.ge.s32.totalorder %s13, 5
      %s23 = sphi 0, %s25
      %s26 = sphi 0, %s23
      %s27 = sphi 0, %s26
      %s43 = sphi 0, %s27
      %s49 = sphi 0, %s51
      %s52 = sphi 0, %s49
      %s53 = sphi 0, %s52
      %s69 = sphi 0, %s53
      %s75 = sphi 0, %s77
      %s78 = sphi 0, %s75
      %s79 = sphi 0, %s78
      %s95 = sphi 0, %s79
      %s101 = sphi 0, %s103
      %s104 = sphi 0, %s101
      %s105 = sphi 0, %s104
      %s121 = sphi 0, %s105
      %s127 = sphi 0, %s129
      %s130 = sphi 0, %s127
      %s131 = sphi 0, %s130
      %s147 = sphi 0, %s131
    $region4: #{prompt_learner_target_forward.3} parent=1 // loop_header_branch
      %16 = sbr.rel (%p14) target = $region8
    $region5: #{prompt_learner_target_forward.3} parent=1 // loop_body
      %s18 = ssub.s32 %s13, 1
      %s19 = ssub.s32 %s13, 2
      %s20 = sadd.s32 %s13, 1
      %s21 = ssub.s32 %s13, %s20
      %p22 = scmp.eq.s32.totalorder %s21, 0
      %s24 = sadd.s32 %s23, 1
      %s25 = scalar_select %p22, %s23, %s24
      %p28 = pneg %p22
      %p29 = scmp.eq.s32.totalorder %s13, 2
      %p30 = por %p28, %p29
      %p31 = scmp.ne.s32.totalorder %s23, %s26
      %p32 = scmp.eq.s32.totalorder %s13, 0
      %p33 = por %p31, %p32
      %p34 = scmp.ne.s32.totalorder %s23, %s26
      %p35 = scmp.eq.s32.totalorder %s18, 2
      %p36 = por %p34, %p35
      %p37 = scmp.ne.s32.totalorder %s26, %s27
      %p38 = scmp.eq.s32.totalorder %s18, 0
      %p39 = por %p37, %p38
      %p40 = scmp.ne.s32.totalorder %s26, %s27
      %p41 = scmp.eq.s32.totalorder %s19, 2
      %p42 = por %p40, %p41
      %p44 = scmp.ne.s32.totalorder %s27, %s43
      %p45 = scmp.eq.s32.totalorder %s19, 0
      %p46 = por %p44, %p45
      %s47 = ssub.s32 %s13, %s20
      %p48 = scmp.eq.s32.totalorder %s47, 0
      %s50 = sadd.s32 %s49, 1
      %s51 = scalar_select %p48, %s49, %s50
      %p54 = pneg %p48
      %p55 = scmp.eq.s32.totalorder %s13, 2
      %p56 = por %p54, %p55
      %p57 = scmp.ne.s32.totalorder %s49, %s52
      %p58 = scmp.eq.s32.totalorder %s13, 0
      %p59 = por %p57, %p58
      %p60 = scmp.ne.s32.totalorder %s49, %s52
      %p61 = scmp.eq.s32.totalorder %s18, 2
      %p62 = por %p60, %p61
      %p63 = scmp.ne.s32.totalorder %s52, %s53
      %p64 = scmp.eq.s32.totalorder %s18, 0
      %p65 = por %p63, %p64
      %p66 = scmp.ne.s32.totalorder %s52, %s53
      %p67 = scmp.eq.s32.totalorder %s19, 2
      %p68 = por %p66, %p67
      %p70 = scmp.ne.s32.totalorder %s53, %s69
      %p71 = scmp.eq.s32.totalorder %s19, 0
      %p72 = por %p70, %p71
      %s73 = ssub.s32 %s13, %s20
      %p74 = scmp.eq.s32.totalorder %s73, 0
      %s76 = sadd.s32 %s75, 1
      %s77 = scalar_select %p74, %s75, %s76
      %p80 = pneg %p74
      %p81 = scmp.eq.s32.totalorder %s13, 2
      %p82 = por %p80, %p81
      %p83 = scmp.ne.s32.totalorder %s75, %s78
      %p84 = scmp.eq.s32.totalorder %s13, 0
      %p85 = por %p83, %p84
      %p86 = scmp.ne.s32.totalorder %s75, %s78
      %p87 = scmp.eq.s32.totalorder %s18, 2
      %p88 = por %p86, %p87
      %p89 = scmp.ne.s32.totalorder %s78, %s79
      %p90 = scmp.eq.s32.totalorder %s18, 0
      %p91 = por %p89, %p90
      %p92 = scmp.ne.s32.totalorder %s78, %s79
      %p93 = scmp.eq.s32.totalorder %s19, 2
      %p94 = por %p92, %p93
      %p96 = scmp.ne.s32.totalorder %s79, %s95
      %p97 = scmp.eq.s32.totalorder %s19, 0
      %p98 = por %p96, %p97
      %s99 = ssub.s32 %s13, %s20
      %p100 = scmp.eq.s32.totalorder %s99, 0
      %s102 = sadd.s32 %s101, 1
      %s103 = scalar_select %p100, %s101, %s102
      %p106 = pneg %p100
      %p107 = scmp.eq.s32.totalorder %s13, 2
      %p108 = por %p106, %p107
      %p109 = scmp.ne.s32.totalorder %s101, %s104
      %p110 = scmp.eq.s32.totalorder %s13, 0
      %p111 = por %p109, %p110
      %p112 = scmp.ne.s32.totalorder %s101, %s104
      %p113 = scmp.eq.s32.totalorder %s18, 2
      %p114 = por %p112, %p113
      %p115 = scmp.ne.s32.totalorder %s104, %s105
      %p116 = scmp.eq.s32.totalorder %s18, 0
      %p117 = por %p115, %p116
      %p118 = scmp.ne.s32.totalorder %s104, %s105
      %p119 = scmp.eq.s32.totalorder %s19, 2
      %p120 = por %p118, %p119
      %p122 = scmp.ne.s32.totalorder %s105, %s121
      %p123 = scmp.eq.s32.totalorder %s19, 0
      %p124 = por %p122, %p123
      %s125 = ssub.s32 %s13, %s20
      %p126 = scmp.eq.s32.totalorder %s125, 0
      %s128 = sadd.s32 %s127, 1
      %s129 = scalar_select %p126, %s127, %s128
      %p132 = pneg %p126
      %p133 = scmp.eq.s32.totalorder %s13, 2
      %p134 = por %p132, %p133
      %p135 = scmp.ne.s32.totalorder %s127, %s130
      %p136 = scmp.eq.s32.totalorder %s13, 0
      %p137 = por %p135, %p136
      %p138 = scmp.ne.s32.totalorder %s127, %s130
      %p139 = scmp.eq.s32.totalorder %s18, 2
      %p140 = por %p138, %p139
      %p141 = scmp.ne.s32.totalorder %s130, %s131
      %p142 = scmp.eq.s32.totalorder %s18, 0
      %p143 = por %p141, %p142
      %p144 = scmp.ne.s32.totalorder %s130, %s131
      %p145 = scmp.eq.s32.totalorder %s19, 2
      %p146 = por %p144, %p145
      %p148 = scmp.ne.s32.totalorder %s131, %s147
      %p149 = scmp.eq.s32.totalorder %s19, 0
      %p150 = por %p148, %p149
      %p151 = scmp.le.s32.totalorder 1, %s13
      %p152 = scmp.lt.s32.totalorder %s13, 4
      %p153 = pnand %p151, %p152
      %p154 = pneg %p153
      // Predicated region
      $region9: #{prompt_learner_target_forward.3} parent=5 // pred_check
        _
      $region10: #{prompt_learner_target_forward.3} parent=5 // pred_check_branch
        %156 = sbr.rel (%p153) target = $region12
      $region11: #{prompt_learner_target_forward.3} parent=5 // pred_region
        %s157 = ssub.s32 %s13, 1
      $region12: #{prompt_learner_target_forward.3} parent=5 // pred_fallthru
        _
      %p158 = scmp.lt.s32.totalorder %s13, 3
      // Predicated region
      $region13: #{prompt_learner_target_forward.3} parent=5 // pred_check
        %p159 = pneg %p158
      $region14: #{prompt_learner_target_forward.3} parent=5 // pred_check_branch
        %161 = sbr.rel (%p159) target = $region16
      $region15: #{prompt_learner_target_forward.3} parent=5 // pred_region
        // Predicated region
        $region17: #{prompt_learner_target_forward.3} parent=15 // pred_check
          %p162 = pneg %p33
        $region18: #{prompt_learner_target_forward.3} parent=15 // pred_check_branch
          %164 = sbr.rel (%p162) target = $region20
        $region19: #{prompt_learner_target_forward.3} parent=15 // pred_region
          %s165 = smul.u32 4, %s13
          %p166 = scmp.lt.s32.totalorder %s165, 11
          %s167 = scalar_select %p166, %s165, 11
          %s168 = smul.addr %s167, 4
          %s169 = scalar_lea.vmem %s0, %s168
          %s170 = smul.u32 4, %s13
        $region20: #{prompt_learner_target_forward.3} parent=15 // pred_fallthru
          _
        // Predicated region
        $region21: #{prompt_learner_target_forward.3} parent=15 // pred_check
          %p171 = pneg %p59
        $region22: #{prompt_learner_target_forward.3} parent=15 // pred_check_branch
          %173 = sbr.rel (%p171) target = $region24
        $region23: #{prompt_learner_target_forward.3} parent=15 // pred_region
          %s174 = smul.u32 4, %s13
          %p175 = scmp.lt.s32.totalorder %s174, 11
          %s176 = scalar_select %p175, %s174, 11
          %s177 = smul.addr %s176, 4
          %s178 = scalar_lea.vmem %s1, %s177
          %s179 = smul.u32 4, %s13
        $region24: #{prompt_learner_target_forward.3} parent=15 // pred_fallthru
          _
        // Predicated region
        $region25: #{prompt_learner_target_forward.3} parent=15 // pred_check
          %p180 = pneg %p85
        $region26: #{prompt_learner_target_forward.3} parent=15 // pred_check_branch
          %182 = sbr.rel (%p180) target = $region28
        $region27: #{prompt_learner_target_forward.3} parent=15 // pred_region
          %s183 = smul.u32 4, %s13
          %p184 = scmp.lt.s32.totalorder %s183, 11
          %s185 = scalar_select %p184, %s183, 11
          %s186 = scalar_lea.vmem %s2, %s185
          %s187 = smul.u32 4, %s13
        $region28: #{prompt_learner_target_forward.3} parent=15 // pred_fallthru
          _
        // Predicated region
        $region29: #{prompt_learner_target_forward.3} parent=15 // pred_check
          %p188 = pneg %p111
        $region30: #{prompt_learner_target_forward.3} parent=15 // pred_check_branch
          %190 = sbr.rel (%p188) target = $region32
        $region31: #{prompt_learner_target_forward.3} parent=15 // pred_region
          %s191 = sand.u32 %s101, 1
          %s192 = scalar_lea.sflag [#allocation3], %s191
          %s193 = sand.u32 %s101, 1
          %s194 = smul.addr %s193, 512
          %s195 = scalar_lea.vmem [#allocation2], %s194
          %s196 = smul.u32 4, %s13
          %198 = vsyncadd %s192, 0
          %s199 = smul.addr %s196, 32
          %s200 = smul.addr %s199, 4
          %s201 = scalar_lea.hbm %s3, %s200
          %s202 = sshll.u32 %s201, 4
          %s203 = int_to_ptr.hbm [resolvable:$true] %s202
          %s204 = sshll.u32 %s195, 4
          %s205 = int_to_ptr.vmem [resolvable:$true] %s204
          %210 = dma.hbm_to_vmem [thread:$0]  %s203, 8192, %s205, %s192, 64, 64, 4
        $region32: #{prompt_learner_target_forward.3} parent=15 // pred_fallthru
          _
      $region16: #{prompt_learner_target_forward.3} parent=5 // pred_fallthru
        _
      %p211 = scmp.le.s32.totalorder 1, %s13
      %p212 = scmp.lt.s32.totalorder %s13, 4
      %p213 = pnand %p211, %p212
      %p214 = pneg %p213
      // Predicated region
      $region33: #{prompt_learner_target_forward.3} parent=5 // pred_check
        _
      $region34: #{prompt_learner_target_forward.3} parent=5 // pred_check_branch
        %216 = sbr.rel (%p213) target = $region36
      $region35: #{prompt_learner_target_forward.3} parent=5 // pred_region
        %s217 = ssub.s32 %s13, 1
        %s218 = sand.u32 %s104, 1
        %s219 = scalar_lea.sflag [#allocation3], %s218
        %s220 = sand.u32 %s104, 1
        %s221 = smul.addr %s220, 512
        %s222 = scalar_lea.vmem [#allocation2], %s221
        // Predicated region
        $region37: #{prompt_learner_target_forward.3} parent=35 // pred_check
          %p223 = pneg %p117
        $region38: #{prompt_learner_target_forward.3} parent=35 // pred_check_branch
          %225 = sbr.rel (%p223) target = $region40
        $region39: #{prompt_learner_target_forward.3} parent=35 // pred_region
          %227 = dma.done %s219, 8192
        $region40: #{prompt_learner_target_forward.3} parent=35 // pred_fallthru
          _
        %s228 = smul.u32 4, %s18
        %p229 = scmp.lt.s32.totalorder %s228, 11
        %s230 = scalar_select %p229, %s228, 11
        %s231 = smul.addr %s230, 4
        %s232 = scalar_lea.vmem %s0, %s231
        %p233 = pneg %p39
        %p234 = pneg %p36
        %s235 = smul.u32 4, %s18
        %p236 = scmp.lt.s32.totalorder %s235, 11
        %s237 = scalar_select %p236, %s235, 11
        %s238 = smul.addr %s237, 4
        %s239 = scalar_lea.vmem %s1, %s238
        %p240 = pneg %p65
        %p241 = pneg %p62
        %s242 = smul.u32 4, %s18
        %p243 = scmp.lt.s32.totalorder %s242, 11
        %s244 = scalar_select %p243, %s242, 11
        %s245 = scalar_lea.vmem %s2, %s244
        %p246 = pneg %p91
        %p247 = pneg %p88
        %s248 = sand.u32 %s104, 1
        %s249 = scalar_lea.sflag [#allocation3], %s248
        %s250 = sand.u32 %s104, 1
        %s251 = smul.addr %s250, 512
        %s252 = scalar_lea.vmem [#allocation2], %s251
        %p253 = pneg %p117
        %p254 = pneg %p114
        %p255 = pneg %p143
        %p256 = pneg %p140
        %s257 = smul.u32 4, %s18
        %p258 = scmp.lt.s32.totalorder %s257, 11
        %s259 = scalar_select %p258, %s257, 11
        %s260 = smul.addr %s259, 4
        %s261 = scalar_lea.vmem %s4, %s260
        %s262 = smul.u32 4, %s18
        %p263 = scmp.lt.s32.totalorder %s262, 11
        %s264 = scalar_select %p263, %s262, 11
        %s265 = smul.addr %s264, 4
        %s266 = scalar_lea.vmem %s0, %s265
        %s267 = smul.u32 4, %s18
        %s268 = smul.u32 4, %s18
        %p269 = scmp.lt.s32.totalorder %s268, 11
        %s270 = scalar_select %p269, %s268, 11
        %s271 = smul.addr %s270, 4
        %s272 = scalar_lea.vmem %s1, %s271
        %s273 = smul.u32 4, %s18
        %s274 = smul.u32 4, %s18
        %p275 = scmp.lt.s32.totalorder %s274, 11
        %s276 = scalar_select %p275, %s274, 11
        %s277 = scalar_lea.vmem %s2, %s276
        %s278 = smul.u32 4, %s18
        %s279 = smul.u32 4, %s18
        %s280 = smul.u32 4, %s18
        %p281 = scmp.lt.s32.totalorder %s280, 11
        %s282 = scalar_select %p281, %s280, 11
        %s283 = smul.addr %s282, 4
        %s284 = scalar_lea.vmem %s4, %s283
        %s285 = smul.u32 4, %s18
        %v286 = vld [vmem:[%s266] sm:$0xf]
        %v287 = vpack.c.bf16 %v286, %v286
        %v288 = vld [vmem:[%s272] sm:$0xf]
        %v289 = vpack.c.bf16 %v288, %v288
        %v290 = vld [vmem:[%s222] sm:$0xf]
        %v291 = vld [vmem:[%s222 + $0x4] sm:$0xf]
        %v292 = vld [vmem:[%s222 + $0x8] sm:$0xf]
        %v293 = vld [vmem:[%s222 + $0xc] sm:$0xf]
        %v294 = vld [vmem:[%s222 + $0x10] sm:$0xf]
        %v295 = vld [vmem:[%s222 + $0x14] sm:$0xf]
        %v296 = vld [vmem:[%s222 + $0x18] sm:$0xf]
        %v297 = vld [vmem:[%s222 + $0x1c] sm:$0xf]
        %v298 = vld [vmem:[%s222 + $0x20] sm:$0xf]
        %v299 = vld [vmem:[%s222 + $0x24] sm:$0xf]
        %v300 = vld [vmem:[%s222 + $0x28] sm:$0xf]
        %v301 = vld [vmem:[%s222 + $0x2c] sm:$0xf]
        %v302 = vld [vmem:[%s222 + $0x30] sm:$0xf]
        %v303 = vld [vmem:[%s222 + $0x34] sm:$0xf]
        %v304 = vld [vmem:[%s222 + $0x38] sm:$0xf]
        %v305 = vld [vmem:[%s222 + $0x3c] sm:$0xf]
        %v306 = vld [vmem:[%s222 + $0x40] sm:$0xf]
        %v307 = vld [vmem:[%s222 + $0x44] sm:$0xf]
        %v308 = vld [vmem:[%s222 + $0x48] sm:$0xf]
        %v309 = vld [vmem:[%s222 + $0x4c] sm:$0xf]
        %v310 = vld [vmem:[%s222 + $0x50] sm:$0xf]
        %v311 = vld [vmem:[%s222 + $0x54] sm:$0xf]
        %v312 = vld [vmem:[%s222 + $0x58] sm:$0xf]
        %v313 = vld [vmem:[%s222 + $0x5c] sm:$0xf]
        %v314 = vld [vmem:[%s222 + $0x60] sm:$0xf]
        %v315 = vld [vmem:[%s222 + $0x64] sm:$0xf]
        %v316 = vld [vmem:[%s222 + $0x68] sm:$0xf]
        %v317 = vld [vmem:[%s222 + $0x6c] sm:$0xf]
        %v318 = vld [vmem:[%s222 + $0x70] sm:$0xf]
        %v319 = vld [vmem:[%s222 + $0x74] sm:$0xf]
        %v320 = vld [vmem:[%s222 + $0x78] sm:$0xf]
        %v321 = vld [vmem:[%s222 + $0x7c] sm:$0xf]
        %v338 = vunpack.c.l.b16 %v306
        %v339 = vunpack.c.l.b16 %v307
        %v340 = vunpack.c.l.b16 %v308
        %v341 = vunpack.c.l.b16 %v309
        %v342 = vunpack.c.l.b16 %v310
        %v343 = vunpack.c.l.b16 %v311
        %v344 = vunpack.c.l.b16 %v312
        %v345 = vunpack.c.l.b16 %v313
        %v346 = vunpack.c.l.b16 %v314
        %v347 = vunpack.c.l.b16 %v315
        %v348 = vunpack.c.l.b16 %v316
        %v349 = vunpack.c.l.b16 %v317
        %v350 = vunpack.c.l.b16 %v318
        %v351 = vunpack.c.l.b16 %v319
        %v352 = vunpack.c.l.b16 %v320
        %v353 = vunpack.c.l.b16 %v321
        %v354 = vpack.c.b16 %v339, %v338
        %v355 = vpack.c.b16 %v341, %v340
        %v356 = vpack.c.b16 %v343, %v342
        %v357 = vpack.c.b16 %v345, %v344
        %v358 = vpack.c.b16 %v347, %v346
        %v359 = vpack.c.b16 %v349, %v348
        %v360 = vpack.c.b16 %v351, %v350
        %v361 = vpack.c.b16 %v353, %v352
        %370 = vmatpush.bf16.msra.mxu0 %v361
        %371 = vmatpush.bf16.msra.mxu0 %v360
        %372 = vmatpush.bf16.msra.mxu0 %v359
        %373 = vmatpush.bf16.msra.mxu0 %v358
        %374 = vmatpush.bf16.msra.mxu0 %v357
        %375 = vmatpush.bf16.msra.mxu0 %v356
        %376 = vmatpush.bf16.msra.mxu0 %v355
        %377 = vmatpush.bf16.msra.mxu0 %v354
        %378 = vmatmul.bf16.gmra.mxu0 %v289
        %v379 = vpop.f32.mrf.mxu0
        %v380 = vadd.f32 0.0, %v379
        %v381 = vpop.f32.mrf.mxu0
        %382 = vdwg.mxu0
        %v399 = vunpack.c.l.b16 %v290
        %v400 = vunpack.c.l.b16 %v291
        %v401 = vunpack.c.l.b16 %v292
        %v402 = vunpack.c.l.b16 %v293
        %v403 = vunpack.c.l.b16 %v294
        %v404 = vunpack.c.l.b16 %v295
        %v405 = vunpack.c.l.b16 %v296
        %v406 = vunpack.c.l.b16 %v297
        %v407 = vunpack.c.l.b16 %v298
        %v408 = vunpack.c.l.b16 %v299
        %v409 = vunpack.c.l.b16 %v300
        %v410 = vunpack.c.l.b16 %v301
        %v411 = vunpack.c.l.b16 %v302
        %v412 = vunpack.c.l.b16 %v303
        %v413 = vunpack.c.l.b16 %v304
        %v414 = vunpack.c.l.b16 %v305
        %v415 = vpack.c.b16 %v400, %v399
        %v416 = vpack.c.b16 %v402, %v401
        %v417 = vpack.c.b16 %v404, %v403
        %v418 = vpack.c.b16 %v406, %v405
        %v419 = vpack.c.b16 %v408, %v407
        %v420 = vpack.c.b16 %v410, %v409
        %v421 = vpack.c.b16 %v412, %v411
        %v422 = vpack.c.b16 %v414, %v413
        %431 = vmatpush.bf16.msra.mxu0 %v422
        %432 = vmatpush.bf16.msra.mxu0 %v421
        %433 = vmatpush.bf16.msra.mxu0 %v420
        %434 = vmatpush.bf16.msra.mxu0 %v419
        %435 = vmatpush.bf16.msra.mxu0 %v418
        %436 = vmatpush.bf16.msra.mxu0 %v417
        %437 = vmatpush.bf16.msra.mxu0 %v416
        %438 = vmatpush.bf16.msra.mxu0 %v415
        %439 = vmatmul.bf16.gmra.mxu0 %v287
        %v440 = vpop.f32.mrf.mxu0
        %v441 = vadd.f32 %v380, %v440
        %v442 = vpop.f32.mrf.mxu0
        %443 = vdwg.mxu0
        %v444 = vld [vmem:[%s277] sm:$0x1]
        %v446 = vperm.slane %v444, 0
        %v448 = vadd.f32 %v441, %v446
        %449 = vst [vmem:[%s284] sm:$0xf] %v448
        %s450 = scalar_lea.vmem %s266, 4
        %v451 = vld [vmem:[%s450] sm:$0xf]
        %v452 = vpack.c.bf16 %v451, %v451
        %s453 = scalar_lea.vmem %s272, 4
        %v454 = vld [vmem:[%s453] sm:$0xf]
        %v455 = vpack.c.bf16 %v454, %v454
        %s456 = scalar_lea.vmem %s222, 128 [#allocation2]
        %v457 = vld [vmem:[%s456] sm:$0xf]
        %v458 = vld [vmem:[%s456 + $0x4] sm:$0xf]
        %v459 = vld [vmem:[%s456 + $0x8] sm:$0xf]
        %v460 = vld [vmem:[%s456 + $0xc] sm:$0xf]
        %v461 = vld [vmem:[%s456 + $0x10] sm:$0xf]
        %v462 = vld [vmem:[%s456 + $0x14] sm:$0xf]
        %v463 = vld [vmem:[%s456 + $0x18] sm:$0xf]
        %v464 = vld [vmem:[%s456 + $0x1c] sm:$0xf]
        %v465 = vld [vmem:[%s456 + $0x20] sm:$0xf]
        %v466 = vld [vmem:[%s456 + $0x24] sm:$0xf]
        %v467 = vld [vmem:[%s456 + $0x28] sm:$0xf]
        %v468 = vld [vmem:[%s456 + $0x2c] sm:$0xf]
        %v469 = vld [vmem:[%s456 + $0x30] sm:$0xf]
        %v470 = vld [vmem:[%s456 + $0x34] sm:$0xf]
        %v471 = vld [vmem:[%s456 + $0x38] sm:$0xf]
        %v472 = vld [vmem:[%s456 + $0x3c] sm:$0xf]
        %v473 = vld [vmem:[%s456 + $0x40] sm:$0xf]
        %v474 = vld [vmem:[%s456 + $0x44] sm:$0xf]
        %v475 = vld [vmem:[%s456 + $0x48] sm:$0xf]
        %v476 = vld [vmem:[%s456 + $0x4c] sm:$0xf]
        %v477 = vld [vmem:[%s456 + $0x50] sm:$0xf]
        %v478 = vld [vmem:[%s456 + $0x54] sm:$0xf]
        %v479 = vld [vmem:[%s456 + $0x58] sm:$0xf]
        %v480 = vld [vmem:[%s456 + $0x5c] sm:$0xf]
        %v481 = vld [vmem:[%s456 + $0x60] sm:$0xf]
        %v482 = vld [vmem:[%s456 + $0x64] sm:$0xf]
        %v483 = vld [vmem:[%s456 + $0x68] sm:$0xf]
        %v484 = vld [vmem:[%s456 + $0x6c] sm:$0xf]
        %v485 = vld [vmem:[%s456 + $0x70] sm:$0xf]
        %v486 = vld [vmem:[%s456 + $0x74] sm:$0xf]
        %v487 = vld [vmem:[%s456 + $0x78] sm:$0xf]
        %v488 = vld [vmem:[%s456 + $0x7c] sm:$0xf]
        %v505 = vunpack.c.l.b16 %v473
        %v506 = vunpack.c.l.b16 %v474
        %v507 = vunpack.c.l.b16 %v475
        %v508 = vunpack.c.l.b16 %v476
        %v509 = vunpack.c.l.b16 %v477
        %v510 = vunpack.c.l.b16 %v478
        %v511 = vunpack.c.l.b16 %v479
        %v512 = vunpack.c.l.b16 %v480
        %v513 = vunpack.c.l.b16 %v481
        %v514 = vunpack.c.l.b16 %v482
        %v515 = vunpack.c.l.b16 %v483
        %v516 = vunpack.c.l.b16 %v484
        %v517 = vunpack.c.l.b16 %v485
        %v518 = vunpack.c.l.b16 %v486
        %v519 = vunpack.c.l.b16 %v487
        %v520 = vunpack.c.l.b16 %v488
        %v521 = vpack.c.b16 %v506, %v505
        %v522 = vpack.c.b16 %v508, %v507
        %v523 = vpack.c.b16 %v510, %v509
        %v524 = vpack.c.b16 %v512, %v511
        %v525 = vpack.c.b16 %v514, %v513
        %v526 = vpack.c.b16 %v516, %v515
        %v527 = vpack.c.b16 %v518, %v517
        %v528 = vpack.c.b16 %v520, %v519
        %537 = vmatpush.bf16.msra.mxu0 %v528
        %538 = vmatpush.bf16.msra.mxu0 %v527
        %539 = vmatpush.bf16.msra.mxu0 %v526
        %540 = vmatpush.bf16.msra.mxu0 %v525
        %541 = vmatpush.bf16.msra.mxu0 %v524
        %542 = vmatpush.bf16.msra.mxu0 %v523
        %543 = vmatpush.bf16.msra.mxu0 %v522
        %544 = vmatpush.bf16.msra.mxu0 %v521
        %545 = vmatmul.bf16.gmra.mxu0 %v455
        %v546 = vpop.f32.mrf.mxu0
        %v547 = vadd.f32 0.0, %v546
        %v548 = vpop.f32.mrf.mxu0
        %549 = vdwg.mxu0
        %v566 = vunpack.c.l.b16 %v457
        %v567 = vunpack.c.l.b16 %v458
        %v568 = vunpack.c.l.b16 %v459
        %v569 = vunpack.c.l.b16 %v460
        %v570 = vunpack.c.l.b16 %v461
        %v571 = vunpack.c.l.b16 %v462
        %v572 = vunpack.c.l.b16 %v463
        %v573 = vunpack.c.l.b16 %v464
        %v574 = vunpack.c.l.b16 %v465
        %v575 = vunpack.c.l.b16 %v466
        %v576 = vunpack.c.l.b16 %v467
        %v577 = vunpack.c.l.b16 %v468
        %v578 = vunpack.c.l.b16 %v469
        %v579 = vunpack.c.l.b16 %v470
        %v580 = vunpack.c.l.b16 %v471
        %v581 = vunpack.c.l.b16 %v472
        %v582 = vpack.c.b16 %v567, %v566
        %v583 = vpack.c.b16 %v569, %v568
        %v584 = vpack.c.b16 %v571, %v570
        %v585 = vpack.c.b16 %v573, %v572
        %v586 = vpack.c.b16 %v575, %v574
        %v587 = vpack.c.b16 %v577, %v576
        %v588 = vpack.c.b16 %v579, %v578
        %v589 = vpack.c.b16 %v581, %v580
        %598 = vmatpush.bf16.msra.mxu0 %v589
        %599 = vmatpush.bf16.msra.mxu0 %v588
        %600 = vmatpush.bf16.msra.mxu0 %v587
        %601 = vmatpush.bf16.msra.mxu0 %v586
        %602 = vmatpush.bf16.msra.mxu0 %v585
        %603 = vmatpush.bf16.msra.mxu0 %v584
        %604 = vmatpush.bf16.msra.mxu0 %v583
        %605 = vmatpush.bf16.msra.mxu0 %v582
        %606 = vmatmul.bf16.gmra.mxu0 %v452
        %v607 = vpop.f32.mrf.mxu0
        %v608 = vadd.f32 %v547, %v607
        %v609 = vpop.f32.mrf.mxu0
        %610 = vdwg.mxu0
        %s611 = scalar_lea.vmem %s277, 1
        %v612 = vld [vmem:[%s611] sm:$0x1]
        %v614 = vperm.slane %v612, 0
        %v616 = vadd.f32 %v608, %v614
        %s617 = scalar_lea.vmem %s284, 4
        %618 = vst [vmem:[%s617] sm:$0xf] %v616
        %s619 = scalar_lea.vmem %s266, 8
        %v620 = vld [vmem:[%s619] sm:$0xf]
        %v621 = vpack.c.bf16 %v620, %v620
        %s622 = scalar_lea.vmem %s272, 8
        %v623 = vld [vmem:[%s622] sm:$0xf]
        %v624 = vpack.c.bf16 %v623, %v623
        %s625 = scalar_lea.vmem %s222, 256 [#allocation2]
        %v626 = vld [vmem:[%s625] sm:$0xf]
        %v627 = vld [vmem:[%s625 + $0x4] sm:$0xf]
        %v628 = vld [vmem:[%s625 + $0x8] sm:$0xf]
        %v629 = vld [vmem:[%s625 + $0xc] sm:$0xf]
        %v630 = vld [vmem:[%s625 + $0x10] sm:$0xf]
        %v631 = vld [vmem:[%s625 + $0x14] sm:$0xf]
        %v632 = vld [vmem:[%s625 + $0x18] sm:$0xf]
        %v633 = vld [vmem:[%s625 + $0x1c] sm:$0xf]
        %v634 = vld [vmem:[%s625 + $0x20] sm:$0xf]
        %v635 = vld [vmem:[%s625 + $0x24] sm:$0xf]
        %v636 = vld [vmem:[%s625 + $0x28] sm:$0xf]
        %v637 = vld [vmem:[%s625 + $0x2c] sm:$0xf]
        %v638 = vld [vmem:[%s625 + $0x30] sm:$0xf]
        %v639 = vld [vmem:[%s625 + $0x34] sm:$0xf]
        %v640 = vld [vmem:[%s625 + $0x38] sm:$0xf]
        %v641 = vld [vmem:[%s625 + $0x3c] sm:$0xf]
        %v642 = vld [vmem:[%s625 + $0x40] sm:$0xf]
        %v643 = vld [vmem:[%s625 + $0x44] sm:$0xf]
        %v644 = vld [vmem:[%s625 + $0x48] sm:$0xf]
        %v645 = vld [vmem:[%s625 + $0x4c] sm:$0xf]
        %v646 = vld [vmem:[%s625 + $0x50] sm:$0xf]
        %v647 = vld [vmem:[%s625 + $0x54] sm:$0xf]
        %v648 = vld [vmem:[%s625 + $0x58] sm:$0xf]
        %v649 = vld [vmem:[%s625 + $0x5c] sm:$0xf]
        %v650 = vld [vmem:[%s625 + $0x60] sm:$0xf]
        %v651 = vld [vmem:[%s625 + $0x64] sm:$0xf]
        %v652 = vld [vmem:[%s625 + $0x68] sm:$0xf]
        %v653 = vld [vmem:[%s625 + $0x6c] sm:$0xf]
        %v654 = vld [vmem:[%s625 + $0x70] sm:$0xf]
        %v655 = vld [vmem:[%s625 + $0x74] sm:$0xf]
        %v656 = vld [vmem:[%s625 + $0x78] sm:$0xf]
        %v657 = vld [vmem:[%s625 + $0x7c] sm:$0xf]
        %v674 = vunpack.c.l.b16 %v642
        %v675 = vunpack.c.l.b16 %v643
        %v676 = vunpack.c.l.b16 %v644
        %v677 = vunpack.c.l.b16 %v645
        %v678 = vunpack.c.l.b16 %v646
        %v679 = vunpack.c.l.b16 %v647
        %v680 = vunpack.c.l.b16 %v648
        %v681 = vunpack.c.l.b16 %v649
        %v682 = vunpack.c.l.b16 %v650
        %v683 = vunpack.c.l.b16 %v651
        %v684 = vunpack.c.l.b16 %v652
        %v685 = vunpack.c.l.b16 %v653
        %v686 = vunpack.c.l.b16 %v654
        %v687 = vunpack.c.l.b16 %v655
        %v688 = vunpack.c.l.b16 %v656
        %v689 = vunpack.c.l.b16 %v657
        %v690 = vpack.c.b16 %v675, %v674
        %v691 = vpack.c.b16 %v677, %v676
        %v692 = vpack.c.b16 %v679, %v678
        %v693 = vpack.c.b16 %v681, %v680
        %v694 = vpack.c.b16 %v683, %v682
        %v695 = vpack.c.b16 %v685, %v684
        %v696 = vpack.c.b16 %v687, %v686
        %v697 = vpack.c.b16 %v689, %v688
        %706 = vmatpush.bf16.msra.mxu0 %v697
        %707 = vmatpush.bf16.msra.mxu0 %v696
        %708 = vmatpush.bf16.msra.mxu0 %v695
        %709 = vmatpush.bf16.msra.mxu0 %v694
        %710 = vmatpush.bf16.msra.mxu0 %v693
        %711 = vmatpush.bf16.msra.mxu0 %v692
        %712 = vmatpush.bf16.msra.mxu0 %v691
        %713 = vmatpush.bf16.msra.mxu0 %v690
        %714 = vmatmul.bf16.gmra.mxu0 %v624
        %v715 = vpop.f32.mrf.mxu0
        %v716 = vadd.f32 0.0, %v715
        %v717 = vpop.f32.mrf.mxu0
        %718 = vdwg.mxu0
        %v735 = vunpack.c.l.b16 %v626
        %v736 = vunpack.c.l.b16 %v627
        %v737 = vunpack.c.l.b16 %v628
        %v738 = vunpack.c.l.b16 %v629
        %v739 = vunpack.c.l.b16 %v630
        %v740 = vunpack.c.l.b16 %v631
        %v741 = vunpack.c.l.b16 %v632
        %v742 = vunpack.c.l.b16 %v633
        %v743 = vunpack.c.l.b16 %v634
        %v744 = vunpack.c.l.b16 %v635
        %v745 = vunpack.c.l.b16 %v636
        %v746 = vunpack.c.l.b16 %v637
        %v747 = vunpack.c.l.b16 %v638
        %v748 = vunpack.c.l.b16 %v639
        %v749 = vunpack.c.l.b16 %v640
        %v750 = vunpack.c.l.b16 %v641
        %v751 = vpack.c.b16 %v736, %v735
        %v752 = vpack.c.b16 %v738, %v737
        %v753 = vpack.c.b16 %v740, %v739
        %v754 = vpack.c.b16 %v742, %v741
        %v755 = vpack.c.b16 %v744, %v743
        %v756 = vpack.c.b16 %v746, %v745
        %v757 = vpack.c.b16 %v748, %v747
        %v758 = vpack.c.b16 %v750, %v749
        %767 = vmatpush.bf16.msra.mxu0 %v758
        %768 = vmatpush.bf16.msra.mxu0 %v757
        %769 = vmatpush.bf16.msra.mxu0 %v756
        %770 = vmatpush.bf16.msra.mxu0 %v755
        %771 = vmatpush.bf16.msra.mxu0 %v754
        %772 = vmatpush.bf16.msra.mxu0 %v753
        %773 = vmatpush.bf16.msra.mxu0 %v752
        %774 = vmatpush.bf16.msra.mxu0 %v751
        %775 = vmatmul.bf16.gmra.mxu0 %v621
        %v776 = vpop.f32.mrf.mxu0
        %v777 = vadd.f32 %v716, %v776
        %v778 = vpop.f32.mrf.mxu0
        %779 = vdwg.mxu0
        %s780 = scalar_lea.vmem %s277, 2
        %v781 = vld [vmem:[%s780] sm:$0x1]
        %v783 = vperm.slane %v781, 0
        %v785 = vadd.f32 %v777, %v783
        %s786 = scalar_lea.vmem %s284, 8
        %787 = vst [vmem:[%s786] sm:$0xf] %v785
        %s788 = scalar_lea.vmem %s266, 12
        %v789 = vld [vmem:[%s788] sm:$0xf]
        %v790 = vpack.c.bf16 %v789, %v789
        %s791 = scalar_lea.vmem %s272, 12
        %v792 = vld [vmem:[%s791] sm:$0xf]
        %v793 = vpack.c.bf16 %v792, %v792
        %s794 = scalar_lea.vmem %s222, 384 [#allocation2]
        %v795 = vld [vmem:[%s794] sm:$0xf]
        %v796 = vld [vmem:[%s794 + $0x4] sm:$0xf]
        %v797 = vld [vmem:[%s794 + $0x8] sm:$0xf]
        %v798 = vld [vmem:[%s794 + $0xc] sm:$0xf]
        %v799 = vld [vmem:[%s794 + $0x10] sm:$0xf]
        %v800 = vld [vmem:[%s794 + $0x14] sm:$0xf]
        %v801 = vld [vmem:[%s794 + $0x18] sm:$0xf]
        %v802 = vld [vmem:[%s794 + $0x1c] sm:$0xf]
        %v803 = vld [vmem:[%s794 + $0x20] sm:$0xf]
        %v804 = vld [vmem:[%s794 + $0x24] sm:$0xf]
        %v805 = vld [vmem:[%s794 + $0x28] sm:$0xf]
        %v806 = vld [vmem:[%s794 + $0x2c] sm:$0xf]
        %v807 = vld [vmem:[%s794 + $0x30] sm:$0xf]
        %v808 = vld [vmem:[%s794 + $0x34] sm:$0xf]
        %v809 = vld [vmem:[%s794 + $0x38] sm:$0xf]
        %v810 = vld [vmem:[%s794 + $0x3c] sm:$0xf]
        %v811 = vld [vmem:[%s794 + $0x40] sm:$0xf]
        %v812 = vld [vmem:[%s794 + $0x44] sm:$0xf]
        %v813 = vld [vmem:[%s794 + $0x48] sm:$0xf]
        %v814 = vld [vmem:[%s794 + $0x4c] sm:$0xf]
        %v815 = vld [vmem:[%s794 + $0x50] sm:$0xf]
        %v816 = vld [vmem:[%s794 + $0x54] sm:$0xf]
        %v817 = vld [vmem:[%s794 + $0x58] sm:$0xf]
        %v818 = vld [vmem:[%s794 + $0x5c] sm:$0xf]
        %v819 = vld [vmem:[%s794 + $0x60] sm:$0xf]
        %v820 = vld [vmem:[%s794 + $0x64] sm:$0xf]
        %v821 = vld [vmem:[%s794 + $0x68] sm:$0xf]
        %v822 = vld [vmem:[%s794 + $0x6c] sm:$0xf]
        %v823 = vld [vmem:[%s794 + $0x70] sm:$0xf]
        %v824 = vld [vmem:[%s794 + $0x74] sm:$0xf]
        %v825 = vld [vmem:[%s794 + $0x78] sm:$0xf]
        %v826 = vld [vmem:[%s794 + $0x7c] sm:$0xf]
        %v843 = vunpack.c.l.b16 %v811
        %v844 = vunpack.c.l.b16 %v812
        %v845 = vunpack.c.l.b16 %v813
        %v846 = vunpack.c.l.b16 %v814
        %v847 = vunpack.c.l.b16 %v815
        %v848 = vunpack.c.l.b16 %v816
        %v849 = vunpack.c.l.b16 %v817
        %v850 = vunpack.c.l.b16 %v818
        %v851 = vunpack.c.l.b16 %v819
        %v852 = vunpack.c.l.b16 %v820
        %v853 = vunpack.c.l.b16 %v821
        %v854 = vunpack.c.l.b16 %v822
        %v855 = vunpack.c.l.b16 %v823
        %v856 = vunpack.c.l.b16 %v824
        %v857 = vunpack.c.l.b16 %v825
        %v858 = vunpack.c.l.b16 %v826
        %v859 = vpack.c.b16 %v844, %v843
        %v860 = vpack.c.b16 %v846, %v845
        %v861 = vpack.c.b16 %v848, %v847
        %v862 = vpack.c.b16 %v850, %v849
        %v863 = vpack.c.b16 %v852, %v851
        %v864 = vpack.c.b16 %v854, %v853
        %v865 = vpack.c.b16 %v856, %v855
        %v866 = vpack.c.b16 %v858, %v857
        %875 = vmatpush.bf16.msra.mxu0 %v866
        %876 = vmatpush.bf16.msra.mxu0 %v865
        %877 = vmatpush.bf16.msra.mxu0 %v864
        %878 = vmatpush.bf16.msra.mxu0 %v863
        %879 = vmatpush.bf16.msra.mxu0 %v862
        %880 = vmatpush.bf16.msra.mxu0 %v861
        %881 = vmatpush.bf16.msra.mxu0 %v860
        %882 = vmatpush.bf16.msra.mxu0 %v859
        %883 = vmatmul.bf16.gmra.mxu0 %v793
        %v884 = vpop.f32.mrf.mxu0
        %v885 = vadd.f32 0.0, %v884
        %v886 = vpop.f32.mrf.mxu0
        %887 = vdwg.mxu0
        %v904 = vunpack.c.l.b16 %v795
        %v905 = vunpack.c.l.b16 %v796
        %v906 = vunpack.c.l.b16 %v797
        %v907 = vunpack.c.l.b16 %v798
        %v908 = vunpack.c.l.b16 %v799
        %v909 = vunpack.c.l.b16 %v800
        %v910 = vunpack.c.l.b16 %v801
        %v911 = vunpack.c.l.b16 %v802
        %v912 = vunpack.c.l.b16 %v803
        %v913 = vunpack.c.l.b16 %v804
        %v914 = vunpack.c.l.b16 %v805
        %v915 = vunpack.c.l.b16 %v806
        %v916 = vunpack.c.l.b16 %v807
        %v917 = vunpack.c.l.b16 %v808
        %v918 = vunpack.c.l.b16 %v809
        %v919 = vunpack.c.l.b16 %v810
        %v920 = vpack.c.b16 %v905, %v904
        %v921 = vpack.c.b16 %v907, %v906
        %v922 = vpack.c.b16 %v909, %v908
        %v923 = vpack.c.b16 %v911, %v910
        %v924 = vpack.c.b16 %v913, %v912
        %v925 = vpack.c.b16 %v915, %v914
        %v926 = vpack.c.b16 %v917, %v916
        %v927 = vpack.c.b16 %v919, %v918
        %936 = vmatpush.bf16.msra.mxu0 %v927
        %937 = vmatpush.bf16.msra.mxu0 %v926
        %938 = vmatpush.bf16.msra.mxu0 %v925
        %939 = vmatpush.bf16.msra.mxu0 %v924
        %940 = vmatpush.bf16.msra.mxu0 %v923
        %941 = vmatpush.bf16.msra.mxu0 %v922
        %942 = vmatpush.bf16.msra.mxu0 %v921
        %943 = vmatpush.bf16.msra.mxu0 %v920
        %944 = vmatmul.bf16.gmra.mxu0 %v790
        %v945 = vpop.f32.mrf.mxu0
        %v946 = vadd.f32 %v885, %v945
        %v947 = vpop.f32.mrf.mxu0
        %948 = vdwg.mxu0
        %s949 = scalar_lea.vmem %s277, 3
        %v950 = vld [vmem:[%s949] sm:$0x1]
        %v952 = vperm.slane %v950, 0
        %v954 = vadd.f32 %v946, %v952
        %s955 = scalar_lea.vmem %s284, 12
        %956 = vst [vmem:[%s955] sm:$0xf] %v954
        %s957 = smul.u32 4, %s18
        %p958 = scmp.lt.s32.totalorder %s957, 11
        %s959 = scalar_select %p958, %s957, 11
        %s960 = smul.addr %s959, 4
        %s961 = scalar_lea.vmem %s4, %s960
        // Predicated region
        $region41: #{prompt_learner_target_forward.3} parent=35 // pred_check
          %p962 = pneg %p140
        $region42: #{prompt_learner_target_forward.3} parent=35 // pred_check_branch
          %964 = sbr.rel (%p962) target = $region44
        $region43: #{prompt_learner_target_forward.3} parent=35 // pred_region
          %s965 = smul.u32 4, %s18
        $region44: #{prompt_learner_target_forward.3} parent=35 // pred_fallthru
          _
      $region36: #{prompt_learner_target_forward.3} parent=5 // pred_fallthru
        _
      %p966 = scmp.le.s32.totalorder 2, %s13
      // Predicated region
      $region45: #{prompt_learner_target_forward.3} parent=5 // pred_check
        %p967 = pneg %p966
      $region46: #{prompt_learner_target_forward.3} parent=5 // pred_check_branch
        %969 = sbr.rel (%p967) target = $region48
      $region47: #{prompt_learner_target_forward.3} parent=5 // pred_region
        %s970 = ssub.s32 %s13, 2
        // Predicated region
        $region49: #{prompt_learner_target_forward.3} parent=47 // pred_check
          %p971 = pneg %p146
        $region50: #{prompt_learner_target_forward.3} parent=47 // pred_check_branch
          %973 = sbr.rel (%p971) target = $region52
        $region51: #{prompt_learner_target_forward.3} parent=47 // pred_region
          %s974 = smul.u32 4, %s19
          %p975 = scmp.lt.s32.totalorder %s974, 11
          %s976 = scalar_select %p975, %s974, 11
          %s977 = smul.addr %s976, 4
          %s978 = scalar_lea.vmem %s4, %s977
        $region52: #{prompt_learner_target_forward.3} parent=47 // pred_fallthru
          _
      $region48: #{prompt_learner_target_forward.3} parent=5 // pred_fallthru
        _
    $region6: #{prompt_learner_target_forward.3} parent=1 // loop_footer
      %s17 = sadd.s32 1, %s13
    $region7: #{prompt_learner_target_forward.3} parent=1 // loop_footer_branch
      %12 = sbr.rel target = $region3
    $region8: #{prompt_learner_target_forward.3} parent=1 // loop_exit
      _
    %979 = vsyncpa [#allocation3], 1
    %s980 = scalar_lea.sflag [#allocation3], 1
    %981 = vsyncpa %s980, 1

</llo_original>
